<compile_context>
chip_gen: v5e
topology: v5e:2x2
jax: 0.10.0
libtpu: 0.0.40
codegen_flags: <defaults>
</compile_context>

<pallas_src>
import functools
import math

import jax
import jax.numpy as jnp
from jax.experimental import pallas as pl
from jax.experimental.pallas import tpu as pltpu


def _round_up(x, m):
    return (x + m - 1) // m * m


def _cdiv(a, b):
    return -(-a // b)


# --------------------------------------------------------------------------
# Pallas kernel: conv (K accumulated tap matmuls) + bias + fused GLU
# --------------------------------------------------------------------------
def _conv_glu_tap_kernel(xe_ref, xo_ref, be_ref, bo_ref, w_ref, b_ref, o_ref,
                         *, batch):
    # xe/xo : (tile_rows, C)       bf16  even / odd time-phase input rows
    #                                    (row = time-major flattened (t, b))
    # be/bo : (bnd_rows, C)        bf16  halo: first rows of the *next* tile
    # w_ref : (K, C, 2*H_pad)      bf16  per-tap weights, value|gate packed
    # b_ref : (1, 2*H_pad)         f32   bias, value|gate packed
    # o_ref : (tile_rows, H_pad)   bf16/f32 GLU output tile
    k = w_ref.shape[0]
    h_pad = o_ref.shape[-1]

    mains = (xe_ref[...], xo_ref[...])
    bnds = (be_ref[...], bo_ref[...])

    acc = None
    for j in range(k):                       # static unroll over conv taps
        p, s = j % 2, j // 2                 # phase / time shift of tap j
        xj = mains[p]
        if s > 0:
            shift = s * batch                # shift by s time steps = s*B rows
            xj = jnp.concatenate([xj[shift:], bnds[p][:shift]], axis=0)
        d = jnp.dot(xj, w_ref[j], preferred_element_type=jnp.float32)
        acc = d if acc is None else acc + d
    acc = acc + b_ref[...]                   # f32 bias, broadcast over rows

    val = acc[:, :h_pad]                     # 128-aligned lane split (free)
    gate = acc[:, h_pad:]
    o_ref[...] = (val * jax.nn.sigmoid(gate)).astype(o_ref.dtype)


# --------------------------------------------------------------------------
# One Conv1d(stride=2, padding=k//2) + GLU layer
# --------------------------------------------------------------------------
def _conv_glu_layer(x_tbc, w_taps, bias, h_out, *, out_dtype,
                    tile_m_target=1024, min_grid=2):
    """x_tbc: (T, B, C) bf16 time-major -> (T_out, B, h_out) out_dtype."""
    t_in, b, c = x_tbc.shape
    k = w_taps.shape[0]
    h_pad2 = w_taps.shape[2]
    h_pad = h_pad2 // 2
    pad = k // 2
    t_out = (t_in + 2 * pad - k) // 2 + 1

    # Halo block: the first max(1, (k-1)//2) time steps of the next tile, per
    # phase.  Its sublane size must be a multiple of 16 (bf16 tile) and must
    # divide the per-tile row count so its Blocked element offset is exact.
    s_max = max(1, (k - 1) // 2)
    bnd_rows = _round_up(s_max * b, 16)
    t_align = bnd_rows // math.gcd(bnd_rows, b)

    # Balanced time tiles; prefer >=2 grid steps when there is enough work so
    # v7x's second TensorCore is not idle (no effect on v5e/v6e).
    tile_t_cap = max(t_align, tile_m_target // max(b, 1))
    num_tiles = _cdiv(t_out, tile_t_cap)
    if num_tiles < min_grid and t_out >= min_grid * t_align:
        num_tiles = min_grid
    tile_t = _round_up(_cdiv(t_out, num_tiles), t_align)
    num_tiles = max(1, _cdiv(t_out, tile_t))
    t_out_pad = tile_t * num_tiles
    tile_rows = tile_t * b                   # rows of each matmul tile

    # Zero-pad the time axis (conv padding + room for the last tile's halo),
    # split into even/odd time phases, flatten time-major to lane-dense 2D.
    # Under jit the pad + strided slices fuse into a single producer pass.
    t_half = t_out_pad + _cdiv(bnd_rows, b)
    x_p = jnp.pad(x_tbc, ((pad, 2 * t_half - pad - t_in), (0, 0), (0, 0)))
    x_even = x_p[0::2].reshape(t_half * b, c)
    x_odd = x_p[1::2].reshape(t_half * b, c)

    halo_stride = tile_rows // bnd_rows      # exact by construction

    kernel = functools.partial(_conv_glu_tap_kernel, batch=b)

    out_bytes = t_out_pad * b * h_pad * jnp.dtype(out_dtype).itemsize
    cost = pl.CostEstimate(
        flops=int(2 * t_out_pad * b * (k * c) * h_pad2),
        transcendentals=int(t_out_pad * b * h_pad),
        bytes_accessed=int(2 * t_half * b * c * 2 + k * c * h_pad2 * 2
                           + h_pad2 * 4 + out_bytes),
    )

    out2d = pl.pallas_call(
        kernel,
        out_shape=jax.ShapeDtypeStruct((t_out_pad * b, h_pad), out_dtype),
        grid=(num_tiles,),
        in_specs=[
            pl.BlockSpec((tile_rows, c), lambda i: (i, 0)),            # even phase
            pl.BlockSpec((tile_rows, c), lambda i: (i, 0)),            # odd phase
            pl.BlockSpec((bnd_rows, c),
                         lambda i: ((i + 1) * halo_stride, 0)),        # even halo
            pl.BlockSpec((bnd_rows, c),
                         lambda i: ((i + 1) * halo_stride, 0)),        # odd halo
            pl.BlockSpec((k, c, h_pad2), lambda i: (0, 0, 0)),         # resident W
            pl.BlockSpec((1, h_pad2), lambda i: (0, 0)),               # resident b
        ],
        out_specs=pl.BlockSpec((tile_rows, h_pad), lambda i: (i, 0)),
        compiler_params=pltpu.CompilerParams(
            dimension_semantics=("parallel",),
            vmem_limit_bytes=32 * 1024 * 1024,
        ),
        cost_estimate=cost,
    )(x_even, x_odd, x_even, x_odd, w_taps, bias)

    # (T_out_pad*B, H_pad) -> (T_out, B, h_out): the reshape is a free
    # row-major relabel; the slices drop tile/lane padding.
    return out2d.reshape(t_out_pad, b, h_pad)[:t_out, :, :h_out]


# --------------------------------------------------------------------------
# Module wrapper
# --------------------------------------------------------------------------
class Conv1dSubsamplerPallas:
    """JAX/Pallas re-implementation of the PyTorch Conv1dSubsampler forward."""

    def __init__(self, in_channels, mid_channels, out_channels,
                 kernel_sizes=(3, 3), key=jax.random.PRNGKey(0),
                 tile_m_target=1024):
        self.kernel_sizes = tuple(kernel_sizes)
        self.n_layers = len(self.kernel_sizes)
        self.tile_m_target = tile_m_target
        self.params = []
        keys = jax.random.split(key, 2 * self.n_layers)
        for i, k in enumerate(self.kernel_sizes):
            c_in = in_channels if i == 0 else mid_channels // 2
            c_out = mid_channels if i < self.n_layers - 1 else out_channels * 2
            # PyTorch Conv1d weight shape: (C_out, C_in, K); deterministic init.
            w = 0.02 * jax.random.normal(keys[2 * i], (c_out, c_in, k), jnp.float32)
            bvec = 0.01 * jax.random.normal(keys[2 * i + 1], (c_out,), jnp.float32)

            h = c_out // 2                    # GLU output channels
            h_pad = _round_up(h, 128)         # lane-dense store / split width
            # Per-tap (C_in, 2*H_pad): value half in cols [0,H_pad), gate half
            # in [H_pad, 2*H_pad) so the in-kernel GLU split is lane-aligned.
            taps = []
            for j in range(k):
                wt = w[:, :, j].T             # (C_in, C_out)
                wa = jnp.pad(wt[:, :h], ((0, 0), (0, h_pad - h)))
                wg = jnp.pad(wt[:, h:], ((0, 0), (0, h_pad - h)))
                taps.append(jnp.concatenate([wa, wg], axis=1))
            w_taps = jnp.stack(taps, axis=0).astype(jnp.bfloat16)
            b_a = jnp.pad(bvec[:h], (0, h_pad - h))
            b_g = jnp.pad(bvec[h:], (0, h_pad - h))
            b_packed = jnp.concatenate([b_a, b_g]).reshape(1, 2 * h_pad)

            self.params.append(dict(
                k=k, h=h, h_pad=h_pad,
                w_taps=w_taps, b_packed=b_packed.astype(jnp.float32),
                # f32 im2col-layout copies for the pure-JAX reference
                w_ref=jnp.transpose(w, (2, 1, 0)).reshape(k * c_in, c_out),
                b_ref=bvec.reshape(1, c_out),
            ))
        self._forward = jax.jit(self._forward_impl)

    def get_out_seq_lens(self, in_seq_lens):
        out = in_seq_lens
        for _ in range(self.n_layers):
            out = jnp.floor((out.astype(jnp.float32) - 1.0) / 2.0 + 1.0).astype(jnp.int32)
        return out

    def _forward_impl(self, src_tokens, src_lengths):
        # (B, T, C) -> time-major (T, B, C) bf16 once up front (cast *before*
        # any padding so all layout plumbing moves bf16 bytes); every layer
        # stays time-major so the final (T, B, C) result needs no transpose.
        x = jnp.transpose(src_tokens, (1, 0, 2)).astype(jnp.bfloat16)
        for li, p in enumerate(self.params):
            last = li == self.n_layers - 1
            x = _conv_glu_layer(
                x, p["w_taps"], p["b_packed"], p["h"],
                out_dtype=jnp.float32 if last else jnp.bfloat16,
                tile_m_target=self.tile_m_target)
        return x, self.get_out_seq_lens(src_lengths)

    def __call__(self, src_tokens, src_lengths):
        return self._forward(src_tokens, src_lengths)


# --------------------------------------------------------------------------
# Pure-JAX f32 reference (kernel uses bf16 on the MXU => loose tolerance)
# --------------------------------------------------------------------------
def _im2col_1d(x_btc, k, stride, pad):
    b, t, c = x_btc.shape
    xp = jnp.pad(x_btc, ((0, 0), (pad, pad), (0, 0)))
    t_out = (t + 2 * pad - k) // stride + 1
    cols = [xp[:, j: j + stride * (t_out - 1) + 1: stride, :] for j in range(k)]
    return jnp.concatenate(cols, axis=-1), t_out


def _reference_forward(model, src_tokens, src_lengths):
    x = src_tokens
    for p in model.params:
        patches, _ = _im2col_1d(x, p["k"], 2, p["k"] // 2)
        y = jnp.einsum("btk,kc->btc", patches, p["w_ref"]) + p["b_ref"][0]
        h = p["h"]
        x = y[..., :h] * jax.nn.sigmoid(y[..., h:])
    return jnp.transpose(x, (1, 0, 2)), model.get_out_seq_lens(src_lengths)


if __name__ == "__main__":
    key = jax.random.PRNGKey(0)
    k_tok, k_param, k_tok2 = jax.random.split(key, 3)

    # ---- check 1: small canonical shapes (default tiling) -----------------
    B, T, C_IN, MID, OUT = 2, 16, 8, 16, 8
    src_tokens = jax.random.normal(k_tok, (B, T, C_IN), jnp.float32)
    src_lengths = jnp.array([16, 12], dtype=jnp.int32)

    model = Conv1dSubsamplerPallas(C_IN, MID, OUT, kernel_sizes=(3, 3), key=k_param)
    out, out_lens = model(src_tokens, src_lengths)
    out = jax.block_until_ready(out)
    out_lens = jax.block_until_ready(out_lens)

    ref_out, ref_lens = _reference_forward(model, src_tokens, src_lengths)
    assert out.shape == (4, B, OUT), out.shape
    assert out.dtype == jnp.float32
    assert jnp.allclose(out, ref_out, atol=2e-2, rtol=2e-2), (
        float(jnp.max(jnp.abs(out - ref_out))))
    assert jnp.array_equal(out_lens, ref_lens)

    # ---- check 2: longer sequence + tiny tiles => multi-tile grid where
    #      real data crosses the halo boundary between time tiles -----------
    B2, T2 = 2, 64
    src2 = jax.random.normal(k_tok2, (B2, T2, C_IN), jnp.float32)
    len2 = jnp.array([64, 37], dtype=jnp.int32)
    model_small_tiles = Conv1dSubsamplerPallas(
        C_IN, MID, OUT, kernel_sizes=(3, 3), key=k_param, tile_m_target=8)
    out2, lens2 = model_small_tiles(src2, len2)
    out2 = jax.block_until_ready(out2)

    ref2, ref_lens2 = _reference_forward(model_small_tiles, src2, len2)
    assert out2.shape == ref2.shape, (out2.shape, ref2.shape)
    assert jnp.allclose(out2, ref2, atol=2e-2, rtol=2e-2), (
        float(jnp.max(jnp.abs(out2 - ref2))))
    assert jnp.array_equal(lens2, ref_lens2)

    print("KERNEL_OK")
</pallas_src>

<mosaic_0001>
module attributes {stable_mosaic.version = 11 : i64} {
  func.func @_conv_glu_tap_kernel(%arg0: i32, %arg1: memref<16x8xbf16, #tpu.memory_space<vmem>>, %arg2: memref<16x8xbf16, #tpu.memory_space<vmem>>, %arg3: memref<16x8xbf16, #tpu.memory_space<vmem>>, %arg4: memref<16x8xbf16, #tpu.memory_space<vmem>>, %arg5: memref<3x8x256xbf16, #tpu.memory_space<vmem>>, %arg6: memref<1x256xf32, #tpu.memory_space<vmem>>, %arg7: memref<16x128xf32, #tpu.memory_space<vmem>>) attributes {dimension_semantics = [#tpu.dimension_semantics<parallel>], iteration_bounds = array<i64: 1>, scalar_prefetch = 0 : i64, scratch_operands = 0 : i64, tpu.core_type = #tpu.core_type<tc>, window_params = [{transform_indices = @transform_0, window_bounds = array<i64: 16, 8>}, {transform_indices = @transform_1, window_bounds = array<i64: 16, 8>}, {transform_indices = @transform_2, window_bounds = array<i64: 16, 8>}, {transform_indices = @transform_3, window_bounds = array<i64: 16, 8>}, {pipeline_mode = #tpu.pipeline_mode<synchronous>, transform_indices = @transform_4, window_bounds = array<i64: 3, 8, 256>}, {pipeline_mode = #tpu.pipeline_mode<synchronous>, transform_indices = @transform_5, window_bounds = array<i64: 1, 256>}, {transform_indices = @transform_6, window_bounds = array<i64: 16, 128>}]} {
    %c0 = arith.constant 0 : index
    %c0_0 = arith.constant 0 : index
    %0 = vector.load %arg1[%c0, %c0_0] : memref<16x8xbf16, #tpu.memory_space<vmem>>, vector<16x8xbf16>
    %c0_1 = arith.constant 0 : index
    %c0_2 = arith.constant 0 : index
    %1 = vector.load %arg2[%c0_1, %c0_2] : memref<16x8xbf16, #tpu.memory_space<vmem>>, vector<16x8xbf16>
    %c0_3 = arith.constant 0 : index
    %c0_4 = arith.constant 0 : index
    %2 = vector.load %arg3[%c0_3, %c0_4] : memref<16x8xbf16, #tpu.memory_space<vmem>>, vector<16x8xbf16>
    %c0_5 = arith.constant 0 : index
    %c0_6 = arith.constant 0 : index
    %c0_7 = arith.constant 0 : index
    %3 = vector.load %arg5[%c0_5, %c0_6, %c0_7] : memref<3x8x256xbf16, #tpu.memory_space<vmem>>, vector<1x8x256xbf16>
    %4 = vector.shape_cast %3 : vector<1x8x256xbf16> to vector<8x256xbf16>
    %cst = arith.constant dense<0.000000e+00> : vector<16x256xf32>
    %5 = tpu.matmul %0, %4, %cst {dimension_numbers = #tpu.dot_dimension_numbers<[1], [0], [0], [1], [0, 0, 1, 1], [], []>} : vector<16x8xbf16>, vector<8x256xbf16>, vector<16x256xf32> -> vector<16x256xf32>
    %c1 = arith.constant 1 : index
    %c0_8 = arith.constant 0 : index
    %c0_9 = arith.constant 0 : index
    %6 = vector.load %arg5[%c1, %c0_8, %c0_9] : memref<3x8x256xbf16, #tpu.memory_space<vmem>>, vector<1x8x256xbf16>
    %7 = vector.shape_cast %6 : vector<1x8x256xbf16> to vector<8x256xbf16>
    %cst_10 = arith.constant dense<0.000000e+00> : vector<16x256xf32>
    %8 = tpu.matmul %1, %7, %cst_10 {dimension_numbers = #tpu.dot_dimension_numbers<[1], [0], [0], [1], [0, 0, 1, 1], [], []>} : vector<16x8xbf16>, vector<8x256xbf16>, vector<16x256xf32> -> vector<16x256xf32>
    %9 = arith.addf %5, %8 : vector<16x256xf32>
    %10 = vector.extract_strided_slice %0 {offsets = [2, 0], sizes = [14, 8], strides = [1, 1]} : vector<16x8xbf16> to vector<14x8xbf16>
    %11 = vector.extract_strided_slice %2 {offsets = [0, 0], sizes = [2, 8], strides = [1, 1]} : vector<16x8xbf16> to vector<2x8xbf16>
    %12 = tpu.concatenate %10, %11 in 0 : vector<14x8xbf16>, vector<2x8xbf16> -> vector<16x8xbf16>
    %c2 = arith.constant 2 : index
    %c0_11 = arith.constant 0 : index
    %c0_12 = arith.constant 0 : index
    %13 = vector.load %arg5[%c2, %c0_11, %c0_12] : memref<3x8x256xbf16, #tpu.memory_space<vmem>>, vector<1x8x256xbf16>
    %14 = vector.shape_cast %13 : vector<1x8x256xbf16> to vector<8x256xbf16>
    %cst_13 = arith.constant dense<0.000000e+00> : vector<16x256xf32>
    %15 = tpu.matmul %12, %14, %cst_13 {dimension_numbers = #tpu.dot_dimension_numbers<[1], [0], [0], [1], [0, 0, 1, 1], [], []>} : vector<16x8xbf16>, vector<8x256xbf16>, vector<16x256xf32> -> vector<16x256xf32>
    %16 = arith.addf %9, %15 : vector<16x256xf32>
    %c0_14 = arith.constant 0 : index
    %c0_15 = arith.constant 0 : index
    %17 = vector.load %arg6[%c0_14, %c0_15] : memref<1x256xf32, #tpu.memory_space<vmem>>, vector<1x256xf32>
    %18 = vector.broadcast %17 : vector<1x256xf32> to vector<16x256xf32>
    %19 = arith.addf %16, %18 : vector<16x256xf32>
    %20 = vector.extract_strided_slice %19 {offsets = [0, 0], sizes = [16, 128], strides = [1, 1]} : vector<16x256xf32> to vector<16x128xf32>
    %21 = vector.extract_strided_slice %19 {offsets = [0, 128], sizes = [16, 128], strides = [1, 1]} : vector<16x256xf32> to vector<16x128xf32>
    %22 = arith.negf %21 : vector<16x128xf32>
    %23 = math.exp %22 : vector<16x128xf32>
    %cst_16 = arith.constant 1.000000e+00 : f32
    %24 = vector.broadcast %cst_16 : f32 to vector<16x128xf32>
    %25 = arith.addf %24, %23 : vector<16x128xf32>
    %26 = arith.divf %24, %25 : vector<16x128xf32>
    %27 = arith.mulf %20, %26 : vector<16x128xf32>
    %c0_17 = arith.constant 0 : index
    %c0_18 = arith.constant 0 : index
    %28 = vector.load %arg7[%c0_17, %c0_18] : memref<16x128xf32, #tpu.memory_space<vmem>>, vector<16x128xf32>
    tpu.vector_store %arg7[%c0_17, %c0_18], %27 {strides = array<i32>} : memref<16x128xf32, #tpu.memory_space<vmem>>, vector<16x128xf32>,
    return
  }
  func.func @transform_0(%arg0: i32) -> (i32, i32) {
    %c0_i32 = arith.constant 0 : i32
    %c0_i32_0 = arith.constant 0 : i32
    return %arg0, %c0_i32 : i32, i32
  }
  func.func @transform_1(%arg0: i32) -> (i32, i32) {
    %c0_i32 = arith.constant 0 : i32
    %c0_i32_0 = arith.constant 0 : i32
    return %arg0, %c0_i32 : i32, i32
  }
  func.func @transform_2(%arg0: i32) -> (i32, i32) {
    %c1_i32 = arith.constant 1 : i32
    %0 = arith.addi %arg0, %c1_i32 : i32
    %c1_i32_0 = arith.constant 1 : i32
    %1 = arith.muli %0, %c1_i32_0 : i32
    %c0_i32 = arith.constant 0 : i32
    %c0_i32_1 = arith.constant 0 : i32
    return %1, %c0_i32 : i32, i32
  }
  func.func @transform_3(%arg0: i32) -> (i32, i32) {
    %c1_i32 = arith.constant 1 : i32
    %0 = arith.addi %arg0, %c1_i32 : i32
    %c1_i32_0 = arith.constant 1 : i32
    %1 = arith.muli %0, %c1_i32_0 : i32
    %c0_i32 = arith.constant 0 : i32
    %c0_i32_1 = arith.constant 0 : i32
    return %1, %c0_i32 : i32, i32
  }
  func.func @transform_4(%arg0: i32) -> (i32, i32, i32) {
    %c0_i32 = arith.constant 0 : i32
    %c0_i32_0 = arith.constant 0 : i32
    %c0_i32_1 = arith.constant 0 : i32
    %c0_i32_2 = arith.constant 0 : i32
    return %c0_i32, %c0_i32_0, %c0_i32_1 : i32, i32, i32
  }
  func.func @transform_5(%arg0: i32) -> (i32, i32) {
    %c0_i32 = arith.constant 0 : i32
    %c0_i32_0 = arith.constant 0 : i32
    %c0_i32_1 = arith.constant 0 : i32
    return %c0_i32, %c0_i32_0 : i32, i32
  }
  func.func @transform_6(%arg0: i32) -> (i32, i32) {
    %c0_i32 = arith.constant 0 : i32
    %c0_i32_0 = arith.constant 0 : i32
    return %arg0, %c0_i32 : i32, i32
  }
}

module attributes {stable_mosaic.version = 11 : i64} {
  func.func @_conv_glu_tap_kernel(%arg0: i32, %arg1: memref<16x8xbf16, #tpu.memory_space<vmem>>, %arg2: memref<16x8xbf16, #tpu.memory_space<vmem>>, %arg3: memref<16x8xbf16, #tpu.memory_space<vmem>>, %arg4: memref<16x8xbf16, #tpu.memory_space<vmem>>, %arg5: memref<3x8x256xbf16, #tpu.memory_space<vmem>>, %arg6: memref<1x256xf32, #tpu.memory_space<vmem>>, %arg7: memref<16x128xbf16, #tpu.memory_space<vmem>>) attributes {dimension_semantics = [#tpu.dimension_semantics<parallel>], iteration_bounds = array<i64: 1>, scalar_prefetch = 0 : i64, scratch_operands = 0 : i64, tpu.core_type = #tpu.core_type<tc>, window_params = [{transform_indices = @transform_0, window_bounds = array<i64: 16, 8>}, {transform_indices = @transform_1, window_bounds = array<i64: 16, 8>}, {transform_indices = @transform_2, window_bounds = array<i64: 16, 8>}, {transform_indices = @transform_3, window_bounds = array<i64: 16, 8>}, {pipeline_mode = #tpu.pipeline_mode<synchronous>, transform_indices = @transform_4, window_bounds = array<i64: 3, 8, 256>}, {pipeline_mode = #tpu.pipeline_mode<synchronous>, transform_indices = @transform_5, window_bounds = array<i64: 1, 256>}, {transform_indices = @transform_6, window_bounds = array<i64: 16, 128>}]} {
    %c0 = arith.constant 0 : index
    %c0_0 = arith.constant 0 : index
    %0 = vector.load %arg1[%c0, %c0_0] : memref<16x8xbf16, #tpu.memory_space<vmem>>, vector<16x8xbf16>
    %c0_1 = arith.constant 0 : index
    %c0_2 = arith.constant 0 : index
    %1 = vector.load %arg2[%c0_1, %c0_2] : memref<16x8xbf16, #tpu.memory_space<vmem>>, vector<16x8xbf16>
    %c0_3 = arith.constant 0 : index
    %c0_4 = arith.constant 0 : index
    %2 = vector.load %arg3[%c0_3, %c0_4] : memref<16x8xbf16, #tpu.memory_space<vmem>>, vector<16x8xbf16>
    %c0_5 = arith.constant 0 : index
    %c0_6 = arith.constant 0 : index
    %c0_7 = arith.constant 0 : index
    %3 = vector.load %arg5[%c0_5, %c0_6, %c0_7] : memref<3x8x256xbf16, #tpu.memory_space<vmem>>, vector<1x8x256xbf16>
    %4 = vector.shape_cast %3 : vector<1x8x256xbf16> to vector<8x256xbf16>
    %cst = arith.constant dense<0.000000e+00> : vector<16x256xf32>
    %5 = tpu.matmul %0, %4, %cst {dimension_numbers = #tpu.dot_dimension_numbers<[1], [0], [0], [1], [0, 0, 1, 1], [], []>} : vector<16x8xbf16>, vector<8x256xbf16>, vector<16x256xf32> -> vector<16x256xf32>
    %c1 = arith.constant 1 : index
    %c0_8 = arith.constant 0 : index
    %c0_9 = arith.constant 0 : index
    %6 = vector.load %arg5[%c1, %c0_8, %c0_9] : memref<3x8x256xbf16, #tpu.memory_space<vmem>>, vector<1x8x256xbf16>
    %7 = vector.shape_cast %6 : vector<1x8x256xbf16> to vector<8x256xbf16>
    %cst_10 = arith.constant dense<0.000000e+00> : vector<16x256xf32>
    %8 = tpu.matmul %1, %7, %cst_10 {dimension_numbers = #tpu.dot_dimension_numbers<[1], [0], [0], [1], [0, 0, 1, 1], [], []>} : vector<16x8xbf16>, vector<8x256xbf16>, vector<16x256xf32> -> vector<16x256xf32>
    %9 = arith.addf %5, %8 : vector<16x256xf32>
    %10 = vector.extract_strided_slice %0 {offsets = [2, 0], sizes = [14, 8], strides = [1, 1]} : vector<16x8xbf16> to vector<14x8xbf16>
    %11 = vector.extract_strided_slice %2 {offsets = [0, 0], sizes = [2, 8], strides = [1, 1]} : vector<16x8xbf16> to vector<2x8xbf16>
    %12 = tpu.concatenate %10, %11 in 0 : vector<14x8xbf16>, vector<2x8xbf16> -> vector<16x8xbf16>
    %c2 = arith.constant 2 : index
    %c0_11 = arith.constant 0 : index
    %c0_12 = arith.constant 0 : index
    %13 = vector.load %arg5[%c2, %c0_11, %c0_12] : memref<3x8x256xbf16, #tpu.memory_space<vmem>>, vector<1x8x256xbf16>
    %14 = vector.shape_cast %13 : vector<1x8x256xbf16> to vector<8x256xbf16>
    %cst_13 = arith.constant dense<0.000000e+00> : vector<16x256xf32>
    %15 = tpu.matmul %12, %14, %cst_13 {dimension_numbers = #tpu.dot_dimension_numbers<[1], [0], [0], [1], [0, 0, 1, 1], [], []>} : vector<16x8xbf16>, vector<8x256xbf16>, vector<16x256xf32> -> vector<16x256xf32>
    %16 = arith.addf %9, %15 : vector<16x256xf32>
    %c0_14 = arith.constant 0 : index
    %c0_15 = arith.constant 0 : index
    %17 = vector.load %arg6[%c0_14, %c0_15] : memref<1x256xf32, #tpu.memory_space<vmem>>, vector<1x256xf32>
    %18 = vector.broadcast %17 : vector<1x256xf32> to vector<16x256xf32>
    %19 = arith.addf %16, %18 : vector<16x256xf32>
    %20 = vector.extract_strided_slice %19 {offsets = [0, 0], sizes = [16, 128], strides = [1, 1]} : vector<16x256xf32> to vector<16x128xf32>
    %21 = vector.extract_strided_slice %19 {offsets = [0, 128], sizes = [16, 128], strides = [1, 1]} : vector<16x256xf32> to vector<16x128xf32>
    %22 = arith.negf %21 : vector<16x128xf32>
    %23 = math.exp %22 : vector<16x128xf32>
    %cst_16 = arith.constant 1.000000e+00 : f32
    %24 = vector.broadcast %cst_16 : f32 to vector<16x128xf32>
    %25 = arith.addf %24, %23 : vector<16x128xf32>
    %26 = arith.divf %24, %25 : vector<16x128xf32>
    %27 = arith.mulf %20, %26 : vector<16x128xf32>
    %28 = arith.truncf %27 : vector<16x128xf32> to vector<16x128xbf16>
    %c0_17 = arith.constant 0 : index
    %c0_18 = arith.constant 0 : index
    %29 = vector.load %arg7[%c0_17, %c0_18] : memref<16x128xbf16, #tpu.memory_space<vmem>>, vector<16x128xbf16>
    tpu.vector_store %arg7[%c0_17, %c0_18], %28 {strides = array<i32>} : memref<16x128xbf16, #tpu.memory_space<vmem>>, vector<16x128xbf16>,
    return
  }
  func.func @transform_0(%arg0: i32) -> (i32, i32) {
    %c0_i32 = arith.constant 0 : i32
    %c0_i32_0 = arith.constant 0 : i32
    return %arg0, %c0_i32 : i32, i32
  }
  func.func @transform_1(%arg0: i32) -> (i32, i32) {
    %c0_i32 = arith.constant 0 : i32
    %c0_i32_0 = arith.constant 0 : i32
    return %arg0, %c0_i32 : i32, i32
  }
  func.func @transform_2(%arg0: i32) -> (i32, i32) {
    %c1_i32 = arith.constant 1 : i32
    %0 = arith.addi %arg0, %c1_i32 : i32
    %c1_i32_0 = arith.constant 1 : i32
    %1 = arith.muli %0, %c1_i32_0 : i32
    %c0_i32 = arith.constant 0 : i32
    %c0_i32_1 = arith.constant 0 : i32
    return %1, %c0_i32 : i32, i32
  }
  func.func @transform_3(%arg0: i32) -> (i32, i32) {
    %c1_i32 = arith.constant 1 : i32
    %0 = arith.addi %arg0, %c1_i32 : i32
    %c1_i32_0 = arith.constant 1 : i32
    %1 = arith.muli %0, %c1_i32_0 : i32
    %c0_i32 = arith.constant 0 : i32
    %c0_i32_1 = arith.constant 0 : i32
    return %1, %c0_i32 : i32, i32
  }
  func.func @transform_4(%arg0: i32) -> (i32, i32, i32) {
    %c0_i32 = arith.constant 0 : i32
    %c0_i32_0 = arith.constant 0 : i32
    %c0_i32_1 = arith.constant 0 : i32
    %c0_i32_2 = arith.constant 0 : i32
    return %c0_i32, %c0_i32_0, %c0_i32_1 : i32, i32, i32
  }
  func.func @transform_5(%arg0: i32) -> (i32, i32) {
    %c0_i32 = arith.constant 0 : i32
    %c0_i32_0 = arith.constant 0 : i32
    %c0_i32_1 = arith.constant 0 : i32
    return %c0_i32, %c0_i32_0 : i32, i32
  }
  func.func @transform_6(%arg0: i32) -> (i32, i32) {
    %c0_i32 = arith.constant 0 : i32
    %c0_i32_0 = arith.constant 0 : i32
    return %arg0, %c0_i32 : i32, i32
  }
}

</mosaic_0001>

<llo_original>
// kernel: _forward_impl.3
$region0: #{_forward_impl.3}
  #allocation0 [shape = 'u32[]', space=smem, size = 0x4, offset = 0x4, fixed_abs, tag = 'smem constant byte address 0x4 - core index']
  #allocation1 [shape = 'u32[72,128]{1,0:T(1,128)}', space=vmem, size = 0x9000, scoped, tag = 'internal scratch']
  %s0 = inlined_call_operand.vmem [shape: bf16[32,8], index: 0, kind: input, shape index: {}, may-alias: {0,2}]
  %s1 = inlined_call_operand.vmem [shape: bf16[32,8], index: 1, kind: input, shape index: {}, may-alias: {1,3}]
  %s2 = inlined_call_operand.vmem [shape: bf16[32,8], index: 2, kind: input, shape index: {}, may-alias: {0,2}]
  %s3 = inlined_call_operand.vmem [shape: bf16[32,8], index: 3, kind: input, shape index: {}, may-alias: {1,3}]
  %s4 = inlined_call_operand.vmem [shape: bf16[3,8,256], index: 4, kind: input, shape index: {}]
  %s5 = inlined_call_operand.vmem [shape: f32[1,256], index: 5, kind: input, shape index: {}]
  %s6 = inlined_call_operand.vmem [shape: f32[16,128], index: 6, kind: output, shape index: {}]
  %s7 = sld [smem:[#allocation0]]
  $region34: #{_forward_impl.3} parent=0
    _
  %s9 = ssub.s32 1, %s7
  %s10 = scalar_select 0, %s9, %s7
  // Predicated region
  $region2: #{_forward_impl.3} parent=0 // pred_check
    _
  $region3: #{_forward_impl.3} parent=0 // pred_check_branch
    %12 = sbr.rel (0) target = $region5
  $region4: #{_forward_impl.3} parent=0 // pred_region
    _
  $region5: #{_forward_impl.3} parent=0 // pred_fallthru
    _
  // Predicated region
  $region6: #{_forward_impl.3} parent=0 // pred_check
    _
  $region7: #{_forward_impl.3} parent=0 // pred_check_branch
    %14 = sbr.rel (0) target = $region9
  $region8: #{_forward_impl.3} parent=0 // pred_region
    _
  $region9: #{_forward_impl.3} parent=0 // pred_fallthru
    _
  // Predicated region
  $region10: #{_forward_impl.3} parent=0 // pred_check
    _
  $region11: #{_forward_impl.3} parent=0 // pred_check_branch
    %16 = sbr.rel (0) target = $region13
  $region12: #{_forward_impl.3} parent=0 // pred_region
    %s17 = sadd.s32 0, 1
    %s18 = smul.u32 2, %s17
    %p19 = scmp.lt.s32.totalorder %s18, 3
    %s20 = scalar_select %p19, %s18, 3
    %s21 = smul.addr %s20, 4
    %s22 = scalar_lea.vmem %s2, %s21
    %s23 = sadd.s32 0, 1
    %s24 = smul.u32 2, %s23
  $region13: #{_forward_impl.3} parent=0 // pred_fallthru
    _
  // Predicated region
  $region14: #{_forward_impl.3} parent=0 // pred_check
    _
  $region15: #{_forward_impl.3} parent=0 // pred_check_branch
    %26 = sbr.rel (0) target = $region17
  $region16: #{_forward_impl.3} parent=0 // pred_region
    %s27 = sadd.s32 0, 1
    %s28 = smul.u32 2, %s27
    %p29 = scmp.lt.s32.totalorder %s28, 3
    %s30 = scalar_select %p29, %s28, 3
    %s31 = smul.addr %s30, 4
    %s32 = scalar_lea.vmem %s3, %s31
    %s33 = sadd.s32 0, 1
    %s34 = smul.u32 2, %s33
  $region17: #{_forward_impl.3} parent=0 // pred_fallthru
    _
  // Predicated region
  $region18: #{_forward_impl.3} parent=0 // pred_check
    _
  $region19: #{_forward_impl.3} parent=0 // pred_check_branch
    %36 = sbr.rel (0) target = $region21
  $region20: #{_forward_impl.3} parent=0 // pred_region
    _
  $region21: #{_forward_impl.3} parent=0 // pred_fallthru
    _
  // Predicated region
  $region22: #{_forward_impl.3} parent=0 // pred_check
    _
  $region23: #{_forward_impl.3} parent=0 // pred_check_branch
    %38 = sbr.rel (0) target = $region25
  $region24: #{_forward_impl.3} parent=0 // pred_region
    _
  $region25: #{_forward_impl.3} parent=0 // pred_fallthru
    _
  %s39 = sadd.s32 0, 1
  %s40 = smul.u32 2, %s39
  %p41 = scmp.lt.s32.totalorder %s40, 3
  %s42 = scalar_select %p41, %s40, 3
  %s43 = smul.addr %s42, 4
  %s44 = scalar_lea.vmem %s2, %s43
  %s45 = sadd.s32 0, 1
  %s46 = smul.u32 2, %s45
  %p47 = scmp.lt.s32.totalorder %s46, 3
  %s48 = scalar_select %p47, %s46, 3
  %s49 = smul.addr %s48, 4
  %s50 = scalar_lea.vmem %s3, %s49
  %s51 = sadd.s32 0, 1
  %s52 = smul.u32 2, %s51
  %p53 = scmp.lt.s32.totalorder %s52, 3
  %s54 = scalar_select %p53, %s52, 3
  %s55 = smul.addr %s54, 4
  %s56 = scalar_lea.vmem %s2, %s55
  %s57 = sadd.s32 0, 1
  %s58 = smul.u32 2, %s57
  %s59 = sadd.s32 0, 1
  %s60 = smul.u32 2, %s59
  %p61 = scmp.lt.s32.totalorder %s60, 3
  %s62 = scalar_select %p61, %s60, 3
  %s63 = smul.addr %s62, 4
  %s64 = scalar_lea.vmem %s3, %s63
  %s65 = sadd.s32 0, 1
  %s66 = smul.u32 2, %s65
  %v68 = vld [vmem:[%s0] sm:$0xf]
  %v69 = vld [vmem:[%s0 + $0x4] sm:$0xf]
  %v70 = vld [vmem:[%s1] sm:$0xf]
  %v71 = vld [vmem:[%s1 + $0x4] sm:$0xf]
  %v72 = vld [vmem:[%s56] sm:$0xf]
  %v73 = vld [vmem:[%s4] sm:$0xff]
  %s74 = scalar_lea.vmem %s4, 8
  %v75 = vld [vmem:[%s74] sm:$0xff]
  %v78 = vunpack.c.l.b16 %v70
  %v79 = vunpack.c.l.b16 %v71
  %v80 = vpack.c.b16 %v79, %v78
  %v82 = vunpack.c.l.b16 %v75
  %v83 = vunpack.c.h.b16 %v75
  %v84 = vpack.c.b16 %v82, %v82
  %v85 = vpack.c.b16 %v83, %v83
  %vm86 = vcmask 64512
  %v88 = vsel %vm86, %v80, 0
  %vm90 = vcmask 1043456
  %v92 = vsel %vm90, %v84, 0
  %v95 = vsel %vm90, %v85, 0
  %97 = vmatpush.bf16.msra.mxu0 0
  %98 = vmatpush.bf16.msra.mxu0 0
  %99 = vmatpush.bf16.msra.mxu0 0
  %100 = vmatpush.bf16.msra.mxu0 0
  %101 = vmatpush.bf16.msra.mxu0 0
  %102 = vmatpush.bf16.msra.mxu0 0
  %103 = vmatpush.bf16.msra.mxu0 0
  %104 = vmatpush.bf16.msra.mxu0 %v92
  %105 = vmatmul.bf16.gmra.mxu0 %v88
  %v106 = vpop.f32.mrf.mxu0
  %v107 = vadd.f32 0.0, %v106
  %v108 = vpop.f32.mrf.mxu0
  %v109 = vadd.f32 0.0, %v108
  %110 = vdwg.mxu0
  %111 = vmatpush.bf16.msra.mxu0 0
  %112 = vmatpush.bf16.msra.mxu0 0
  %113 = vmatpush.bf16.msra.mxu0 0
  %114 = vmatpush.bf16.msra.mxu0 0
  %115 = vmatpush.bf16.msra.mxu0 0
  %116 = vmatpush.bf16.msra.mxu0 0
  %117 = vmatpush.bf16.msra.mxu0 0
  %118 = vmatpush.bf16.msra.mxu0 %v95
  %119 = vmatmul.bf16.gmra.mxu0 %v88
  %v120 = vpop.f32.mrf.mxu0
  %v121 = vadd.f32 0.0, %v120
  %v122 = vpop.f32.mrf.mxu0
  %v123 = vadd.f32 0.0, %v122
  %124 = vdwg.mxu0
  %v127 = vunpack.c.l.b16 %v68
  %v128 = vunpack.c.l.b16 %v69
  %v129 = vpack.c.b16 %v128, %v127
  %v131 = vunpack.c.l.b16 %v73
  %v132 = vunpack.c.h.b16 %v73
  %v133 = vpack.c.b16 %v131, %v131
  %v134 = vpack.c.b16 %v132, %v132
  %v136 = vsel %vm86, %v129, 0
  %v139 = vsel %vm90, %v133, 0
  %v142 = vsel %vm90, %v134, 0
  %144 = vmatpush.bf16.msra.mxu0 0
  %145 = vmatpush.bf16.msra.mxu0 0
  %146 = vmatpush.bf16.msra.mxu0 0
  %147 = vmatpush.bf16.msra.mxu0 0
  %148 = vmatpush.bf16.msra.mxu0 0
  %149 = vmatpush.bf16.msra.mxu0 0
  %150 = vmatpush.bf16.msra.mxu0 0
  %151 = vmatpush.bf16.msra.mxu0 %v139
  %152 = vmatmul.bf16.gmra.mxu0 %v136
  %v153 = vpop.f32.mrf.mxu0
  %v154 = vadd.f32 %v107, %v153
  %v155 = vpop.f32.mrf.mxu0
  %v156 = vadd.f32 %v109, %v155
  %157 = vdwg.mxu0
  %158 = vmatpush.bf16.msra.mxu0 0
  %159 = vmatpush.bf16.msra.mxu0 0
  %160 = vmatpush.bf16.msra.mxu0 0
  %161 = vmatpush.bf16.msra.mxu0 0
  %162 = vmatpush.bf16.msra.mxu0 0
  %163 = vmatpush.bf16.msra.mxu0 0
  %164 = vmatpush.bf16.msra.mxu0 0
  %165 = vmatpush.bf16.msra.mxu0 %v142
  %166 = vmatmul.bf16.gmra.mxu0 %v136
  %v167 = vpop.f32.mrf.mxu0
  %v168 = vadd.f32 %v121, %v167
  %v169 = vpop.f32.mrf.mxu0
  %v170 = vadd.f32 %v123, %v169
  %171 = vdwg.mxu0
  %v172 = vrot.slane %v129, 1
  %v174 = vunpack.c.l.b16 %v72
  %v175 = vpack.c.b16 %v174, %v174
  %v176 = vrot.slane %v175, 1
  %vm177 = vcmask 1046528
  %v180 = vsel %vm177, %v172, %v176
  %s181 = scalar_lea.vmem %s4, 16
  %v182 = vld [vmem:[%s181] sm:$0xff]
  %v184 = vunpack.c.l.b16 %v182
  %v185 = vunpack.c.h.b16 %v182
  %v186 = vpack.c.b16 %v184, %v184
  %v187 = vpack.c.b16 %v185, %v185
  %v188 = vsel %vm86, %v180, 0
  %v191 = vsel %vm90, %v186, 0
  %v194 = vsel %vm90, %v187, 0
  %196 = vmatpush.bf16.msra.mxu0 0
  %197 = vmatpush.bf16.msra.mxu0 0
  %198 = vmatpush.bf16.msra.mxu0 0
  %199 = vmatpush.bf16.msra.mxu0 0
  %200 = vmatpush.bf16.msra.mxu0 0
  %201 = vmatpush.bf16.msra.mxu0 0
  %202 = vmatpush.bf16.msra.mxu0 0
  %203 = vmatpush.bf16.msra.mxu0 %v191
  %204 = vmatmul.bf16.gmra.mxu0 %v188
  %v205 = vpop.f32.mrf.mxu0
  %v206 = vadd.f32 0.0, %v205
  %v207 = vpop.f32.mrf.mxu0
  %v208 = vadd.f32 0.0, %v207
  %209 = vdwg.mxu0
  %210 = vmatpush.bf16.msra.mxu0 0
  %211 = vmatpush.bf16.msra.mxu0 0
  %212 = vmatpush.bf16.msra.mxu0 0
  %213 = vmatpush.bf16.msra.mxu0 0
  %214 = vmatpush.bf16.msra.mxu0 0
  %215 = vmatpush.bf16.msra.mxu0 0
  %216 = vmatpush.bf16.msra.mxu0 0
  %217 = vmatpush.bf16.msra.mxu0 %v194
  %218 = vmatmul.bf16.gmra.mxu0 %v188
  %v219 = vpop.f32.mrf.mxu0
  %v220 = vadd.f32 0.0, %v219
  %v221 = vpop.f32.mrf.mxu0
  %v222 = vadd.f32 0.0, %v221
  %223 = vdwg.mxu0
  %v224 = vadd.f32 %v154, %v206
  %v225 = vadd.f32 %v168, %v220
  %v226 = vadd.f32 %v156, %v208
  %v227 = vadd.f32 %v170, %v222
  %v228 = vld [vmem:[%s5] sm:$0x3]
  %v230 = vperm.slane %v228, 0
  %v231 = vperm.slane %v228, 1
  %v234 = vadd.f32 %v224, %v230
  %v235 = vadd.f32 %v225, %v231
  %v236 = vadd.f32 %v226, %v230
  %v237 = vadd.f32 %v227, %v231
  %v238 = vxor.u32 %v235, 2147483648
  %v239 = vxor.u32 %v237, 2147483648
  %v240 = vmul.f32 %v238, 1.442695
  %v241 = vpow.pop %v240
  %v242 = vmul.f32 %v239, 1.442695
  %v243 = vpow.pop %v242
  %v244 = vadd.f32 %v241, 1.0
  %v245 = vadd.f32 %v243, 1.0
  %v246 = vrcp.pop %v244
  %v247 = vmul.f32 %v244, %v246
  %v248 = vsub.f32 1.0, %v247
  %v249 = vmul.f32 %v246, %v248
  %v250 = vadd.f32 %v246, %v249
  %vm251 = vweird.f32 %v244
  %vm252 = vweird.f32 %v246
  %vm253 = vmor %vm251, %vm252
  %v254 = vsel %vm253, %v246, %v250
  %v255 = vand.u32 2147483647, %v244
  %vm256 = vcmp.eq.f32.partialorder %v255, 8.507059e+37
  %v257 = vand.u32 %v244, 2147483648
  %v258 = vor.u32 1.1754944e-38, %v257
  %v259 = vsel %vm256, %v258, %v254
  %v260 = vmul.f32 1.0, %v259
  %v261 = vrcp.pop %v245
  %v262 = vmul.f32 %v245, %v261
  %v263 = vsub.f32 1.0, %v262
  %v264 = vmul.f32 %v261, %v263
  %v265 = vadd.f32 %v261, %v264
  %vm266 = vweird.f32 %v245
  %vm267 = vweird.f32 %v261
  %vm268 = vmor %vm266, %vm267
  %v269 = vsel %vm268, %v261, %v265
  %v270 = vand.u32 2147483647, %v245
  %vm271 = vcmp.eq.f32.partialorder %v270, 8.507059e+37
  %v272 = vand.u32 %v245, 2147483648
  %v273 = vor.u32 1.1754944e-38, %v272
  %v274 = vsel %vm271, %v273, %v269
  %v275 = vmul.f32 1.0, %v274
  %v276 = vmul.f32 %v234, %v260
  %v277 = vmul.f32 %v236, %v275
  %278 = vst [vmem:[%s6] sm:$0xff] %v276
  %279 = vst [vmem:[%s6 + $0x8] sm:$0xff] %v277
  // Predicated region
  $region26: #{_forward_impl.3} parent=0 // pred_check
    _
  $region27: #{_forward_impl.3} parent=0 // pred_check_branch
    %281 = sbr.rel (0) target = $region29
  $region28: #{_forward_impl.3} parent=0 // pred_region
    _
  $region29: #{_forward_impl.3} parent=0 // pred_fallthru
    _
  // Predicated region
  $region30: #{_forward_impl.3} parent=0 // pred_check
    _
  $region31: #{_forward_impl.3} parent=0 // pred_check_branch
    %283 = sbr.rel (0) target = $region33
  $region32: #{_forward_impl.3} parent=0 // pred_region
    _
  $region33: #{_forward_impl.3} parent=0 // pred_fallthru
    _

// kernel: _forward_impl.2
$region0: #{_forward_impl.2}
  #allocation0 [shape = 'u32[]', space=smem, size = 0x4, offset = 0x4, fixed_abs, tag = 'smem constant byte address 0x4 - core index']
  #allocation1 [shape = 'u32[72,128]{1,0:T(1,128)}', space=vmem, size = 0x9000, scoped, tag = 'internal scratch']
  %s0 = inlined_call_operand.vmem [shape: bf16[32,8], index: 0, kind: input, shape index: {}, may-alias: {0,2}]
  %s1 = inlined_call_operand.vmem [shape: bf16[32,8], index: 1, kind: input, shape index: {}, may-alias: {1,3}]
  %s2 = inlined_call_operand.vmem [shape: bf16[32,8], index: 2, kind: input, shape index: {}, may-alias: {0,2}]
  %s3 = inlined_call_operand.vmem [shape: bf16[32,8], index: 3, kind: input, shape index: {}, may-alias: {1,3}]
  %s4 = inlined_call_operand.vmem [shape: bf16[3,8,256], index: 4, kind: input, shape index: {}]
  %s5 = inlined_call_operand.vmem [shape: f32[1,256], index: 5, kind: input, shape index: {}]
  %s6 = inlined_call_operand.vmem [shape: bf16[16,128], index: 6, kind: output, shape index: {}]
  %s7 = sld [smem:[#allocation0]]
  $region34: #{_forward_impl.2} parent=0
    _
  %s9 = ssub.s32 1, %s7
  %s10 = scalar_select 0, %s9, %s7
  // Predicated region
  $region2: #{_forward_impl.2} parent=0 // pred_check
    _
  $region3: #{_forward_impl.2} parent=0 // pred_check_branch
    %12 = sbr.rel (0) target = $region5
  $region4: #{_forward_impl.2} parent=0 // pred_region
    _
  $region5: #{_forward_impl.2} parent=0 // pred_fallthru
    _
  // Predicated region
  $region6: #{_forward_impl.2} parent=0 // pred_check
    _
  $region7: #{_forward_impl.2} parent=0 // pred_check_branch
    %14 = sbr.rel (0) target = $region9
  $region8: #{_forward_impl.2} parent=0 // pred_region
    _
  $region9: #{_forward_impl.2} parent=0 // pred_fallthru
    _
  // Predicated region
  $region10: #{_forward_impl.2} parent=0 // pred_check
    _
  $region11: #{_forward_impl.2} parent=0 // pred_check_branch
    %16 = sbr.rel (0) target = $region13
  $region12: #{_forward_impl.2} parent=0 // pred_region
    %s17 = sadd.s32 0, 1
    %s18 = smul.u32 2, %s17
    %p19 = scmp.lt.s32.totalorder %s18, 3
    %s20 = scalar_select %p19, %s18, 3
    %s21 = smul.addr %s20, 4
    %s22 = scalar_lea.vmem %s2, %s21
    %s23 = sadd.s32 0, 1
    %s24 = smul.u32 2, %s23
  $region13: #{_forward_impl.2} parent=0 // pred_fallthru
    _
  // Predicated region
  $region14: #{_forward_impl.2} parent=0 // pred_check
    _
  $region15: #{_forward_impl.2} parent=0 // pred_check_branch
    %26 = sbr.rel (0) target = $region17
  $region16: #{_forward_impl.2} parent=0 // pred_region
    %s27 = sadd.s32 0, 1
    %s28 = smul.u32 2, %s27
    %p29 = scmp.lt.s32.totalorder %s28, 3
    %s30 = scalar_select %p29, %s28, 3
    %s31 = smul.addr %s30, 4
    %s32 = scalar_lea.vmem %s3, %s31
    %s33 = sadd.s32 0, 1
    %s34 = smul.u32 2, %s33
  $region17: #{_forward_impl.2} parent=0 // pred_fallthru
    _
  // Predicated region
  $region18: #{_forward_impl.2} parent=0 // pred_check
    _
  $region19: #{_forward_impl.2} parent=0 // pred_check_branch
    %36 = sbr.rel (0) target = $region21
  $region20: #{_forward_impl.2} parent=0 // pred_region
    _
  $region21: #{_forward_impl.2} parent=0 // pred_fallthru
    _
  // Predicated region
  $region22: #{_forward_impl.2} parent=0 // pred_check
    _
  $region23: #{_forward_impl.2} parent=0 // pred_check_branch
    %38 = sbr.rel (0) target = $region25
  $region24: #{_forward_impl.2} parent=0 // pred_region
    _
  $region25: #{_forward_impl.2} parent=0 // pred_fallthru
    _
  %s39 = sadd.s32 0, 1
  %s40 = smul.u32 2, %s39
  %p41 = scmp.lt.s32.totalorder %s40, 3
  %s42 = scalar_select %p41, %s40, 3
  %s43 = smul.addr %s42, 4
  %s44 = scalar_lea.vmem %s2, %s43
  %s45 = sadd.s32 0, 1
  %s46 = smul.u32 2, %s45
  %p47 = scmp.lt.s32.totalorder %s46, 3
  %s48 = scalar_select %p47, %s46, 3
  %s49 = smul.addr %s48, 4
  %s50 = scalar_lea.vmem %s3, %s49
  %s51 = sadd.s32 0, 1
  %s52 = smul.u32 2, %s51
  %p53 = scmp.lt.s32.totalorder %s52, 3
  %s54 = scalar_select %p53, %s52, 3
  %s55 = smul.addr %s54, 4
  %s56 = scalar_lea.vmem %s2, %s55
  %s57 = sadd.s32 0, 1
  %s58 = smul.u32 2, %s57
  %s59 = sadd.s32 0, 1
  %s60 = smul.u32 2, %s59
  %p61 = scmp.lt.s32.totalorder %s60, 3
  %s62 = scalar_select %p61, %s60, 3
  %s63 = smul.addr %s62, 4
  %s64 = scalar_lea.vmem %s3, %s63
  %s65 = sadd.s32 0, 1
  %s66 = smul.u32 2, %s65
  %v68 = vld [vmem:[%s0] sm:$0xf]
  %v69 = vld [vmem:[%s0 + $0x4] sm:$0xf]
  %v70 = vld [vmem:[%s1] sm:$0xf]
  %v71 = vld [vmem:[%s1 + $0x4] sm:$0xf]
  %v72 = vld [vmem:[%s56] sm:$0xf]
  %v73 = vld [vmem:[%s4] sm:$0xff]
  %s74 = scalar_lea.vmem %s4, 8
  %v75 = vld [vmem:[%s74] sm:$0xff]
  %v78 = vunpack.c.l.b16 %v70
  %v79 = vunpack.c.l.b16 %v71
  %v80 = vpack.c.b16 %v79, %v78
  %v82 = vunpack.c.l.b16 %v75
  %v83 = vunpack.c.h.b16 %v75
  %v84 = vpack.c.b16 %v82, %v82
  %v85 = vpack.c.b16 %v83, %v83
  %vm86 = vcmask 64512
  %v88 = vsel %vm86, %v80, 0
  %vm90 = vcmask 1043456
  %v92 = vsel %vm90, %v84, 0
  %v95 = vsel %vm90, %v85, 0
  %97 = vmatpush.bf16.msra.mxu0 0
  %98 = vmatpush.bf16.msra.mxu0 0
  %99 = vmatpush.bf16.msra.mxu0 0
  %100 = vmatpush.bf16.msra.mxu0 0
  %101 = vmatpush.bf16.msra.mxu0 0
  %102 = vmatpush.bf16.msra.mxu0 0
  %103 = vmatpush.bf16.msra.mxu0 0
  %104 = vmatpush.bf16.msra.mxu0 %v92
  %105 = vmatmul.bf16.gmra.mxu0 %v88
  %v106 = vpop.f32.mrf.mxu0
  %v107 = vadd.f32 0.0, %v106
  %v108 = vpop.f32.mrf.mxu0
  %v109 = vadd.f32 0.0, %v108
  %110 = vdwg.mxu0
  %111 = vmatpush.bf16.msra.mxu0 0
  %112 = vmatpush.bf16.msra.mxu0 0
  %113 = vmatpush.bf16.msra.mxu0 0
  %114 = vmatpush.bf16.msra.mxu0 0
  %115 = vmatpush.bf16.msra.mxu0 0
  %116 = vmatpush.bf16.msra.mxu0 0
  %117 = vmatpush.bf16.msra.mxu0 0
  %118 = vmatpush.bf16.msra.mxu0 %v95
  %119 = vmatmul.bf16.gmra.mxu0 %v88
  %v120 = vpop.f32.mrf.mxu0
  %v121 = vadd.f32 0.0, %v120
  %v122 = vpop.f32.mrf.mxu0
  %v123 = vadd.f32 0.0, %v122
  %124 = vdwg.mxu0
  %v127 = vunpack.c.l.b16 %v68
  %v128 = vunpack.c.l.b16 %v69
  %v129 = vpack.c.b16 %v128, %v127
  %v131 = vunpack.c.l.b16 %v73
  %v132 = vunpack.c.h.b16 %v73
  %v133 = vpack.c.b16 %v131, %v131
  %v134 = vpack.c.b16 %v132, %v132
  %v136 = vsel %vm86, %v129, 0
  %v139 = vsel %vm90, %v133, 0
  %v142 = vsel %vm90, %v134, 0
  %144 = vmatpush.bf16.msra.mxu0 0
  %145 = vmatpush.bf16.msra.mxu0 0
  %146 = vmatpush.bf16.msra.mxu0 0
  %147 = vmatpush.bf16.msra.mxu0 0
  %148 = vmatpush.bf16.msra.mxu0 0
  %149 = vmatpush.bf16.msra.mxu0 0
  %150 = vmatpush.bf16.msra.mxu0 0
  %151 = vmatpush.bf16.msra.mxu0 %v139
  %152 = vmatmul.bf16.gmra.mxu0 %v136
  %v153 = vpop.f32.mrf.mxu0
  %v154 = vadd.f32 %v107, %v153
  %v155 = vpop.f32.mrf.mxu0
  %v156 = vadd.f32 %v109, %v155
  %157 = vdwg.mxu0
  %158 = vmatpush.bf16.msra.mxu0 0
  %159 = vmatpush.bf16.msra.mxu0 0
  %160 = vmatpush.bf16.msra.mxu0 0
  %161 = vmatpush.bf16.msra.mxu0 0
  %162 = vmatpush.bf16.msra.mxu0 0
  %163 = vmatpush.bf16.msra.mxu0 0
  %164 = vmatpush.bf16.msra.mxu0 0
  %165 = vmatpush.bf16.msra.mxu0 %v142
  %166 = vmatmul.bf16.gmra.mxu0 %v136
  %v167 = vpop.f32.mrf.mxu0
  %v168 = vadd.f32 %v121, %v167
  %v169 = vpop.f32.mrf.mxu0
  %v170 = vadd.f32 %v123, %v169
  %171 = vdwg.mxu0
  %v172 = vrot.slane %v129, 1
  %v174 = vunpack.c.l.b16 %v72
  %v175 = vpack.c.b16 %v174, %v174
  %v176 = vrot.slane %v175, 1
  %vm177 = vcmask 1046528
  %v180 = vsel %vm177, %v172, %v176
  %s181 = scalar_lea.vmem %s4, 16
  %v182 = vld [vmem:[%s181] sm:$0xff]
  %v184 = vunpack.c.l.b16 %v182
  %v185 = vunpack.c.h.b16 %v182
  %v186 = vpack.c.b16 %v184, %v184
  %v187 = vpack.c.b16 %v185, %v185
  %v188 = vsel %vm86, %v180, 0
  %v191 = vsel %vm90, %v186, 0
  %v194 = vsel %vm90, %v187, 0
  %196 = vmatpush.bf16.msra.mxu0 0
  %197 = vmatpush.bf16.msra.mxu0 0
  %198 = vmatpush.bf16.msra.mxu0 0
  %199 = vmatpush.bf16.msra.mxu0 0
  %200 = vmatpush.bf16.msra.mxu0 0
  %201 = vmatpush.bf16.msra.mxu0 0
  %202 = vmatpush.bf16.msra.mxu0 0
  %203 = vmatpush.bf16.msra.mxu0 %v191
  %204 = vmatmul.bf16.gmra.mxu0 %v188
  %v205 = vpop.f32.mrf.mxu0
  %v206 = vadd.f32 0.0, %v205
  %v207 = vpop.f32.mrf.mxu0
  %v208 = vadd.f32 0.0, %v207
  %209 = vdwg.mxu0
  %210 = vmatpush.bf16.msra.mxu0 0
  %211 = vmatpush.bf16.msra.mxu0 0
  %212 = vmatpush.bf16.msra.mxu0 0
  %213 = vmatpush.bf16.msra.mxu0 0
  %214 = vmatpush.bf16.msra.mxu0 0
  %215 = vmatpush.bf16.msra.mxu0 0
  %216 = vmatpush.bf16.msra.mxu0 0
  %217 = vmatpush.bf16.msra.mxu0 %v194
  %218 = vmatmul.bf16.gmra.mxu0 %v188
  %v219 = vpop.f32.mrf.mxu0
  %v220 = vadd.f32 0.0, %v219
  %v221 = vpop.f32.mrf.mxu0
  %v222 = vadd.f32 0.0, %v221
  %223 = vdwg.mxu0
  %v224 = vadd.f32 %v154, %v206
  %v225 = vadd.f32 %v168, %v220
  %v226 = vadd.f32 %v156, %v208
  %v227 = vadd.f32 %v170, %v222
  %v228 = vld [vmem:[%s5] sm:$0x3]
  %v230 = vperm.slane %v228, 0
  %v231 = vperm.slane %v228, 1
  %v234 = vadd.f32 %v224, %v230
  %v235 = vadd.f32 %v225, %v231
  %v236 = vadd.f32 %v226, %v230
  %v237 = vadd.f32 %v227, %v231
  %v238 = vxor.u32 %v235, 2147483648
  %v239 = vxor.u32 %v237, 2147483648
  %v240 = vmul.f32 %v238, 1.442695
  %v241 = vpow.pop %v240
  %v242 = vmul.f32 %v239, 1.442695
  %v243 = vpow.pop %v242
  %v244 = vadd.f32 %v241, 1.0
  %v245 = vadd.f32 %v243, 1.0
  %v246 = vrcp.pop %v244
  %v247 = vmul.f32 %v244, %v246
  %v248 = vsub.f32 1.0, %v247
  %v249 = vmul.f32 %v246, %v248
  %v250 = vadd.f32 %v246, %v249
  %vm251 = vweird.f32 %v244
  %vm252 = vweird.f32 %v246
  %vm253 = vmor %vm251, %vm252
  %v254 = vsel %vm253, %v246, %v250
  %v255 = vand.u32 2147483647, %v244
  %vm256 = vcmp.eq.f32.partialorder %v255, 8.507059e+37
  %v257 = vand.u32 %v244, 2147483648
  %v258 = vor.u32 1.1754944e-38, %v257
  %v259 = vsel %vm256, %v258, %v254
  %v260 = vmul.f32 1.0, %v259
  %v261 = vrcp.pop %v245
  %v262 = vmul.f32 %v245, %v261
  %v263 = vsub.f32 1.0, %v262
  %v264 = vmul.f32 %v261, %v263
  %v265 = vadd.f32 %v261, %v264
  %vm266 = vweird.f32 %v245
  %vm267 = vweird.f32 %v261
  %vm268 = vmor %vm266, %vm267
  %v269 = vsel %vm268, %v261, %v265
  %v270 = vand.u32 2147483647, %v245
  %vm271 = vcmp.eq.f32.partialorder %v270, 8.507059e+37
  %v272 = vand.u32 %v245, 2147483648
  %v273 = vor.u32 1.1754944e-38, %v272
  %v274 = vsel %vm271, %v273, %v269
  %v275 = vmul.f32 1.0, %v274
  %v276 = vmul.f32 %v234, %v260
  %v277 = vmul.f32 %v236, %v275
  %v278 = vpack.c.bf16 %v276, %v276
  %v279 = vpack.c.bf16 %v277, %v277
  %280 = vst [vmem:[%s6] sm:$0xf] %v278
  %281 = vst [vmem:[%s6 + $0x4] sm:$0xf] %v279
  // Predicated region
  $region26: #{_forward_impl.2} parent=0 // pred_check
    _
  $region27: #{_forward_impl.2} parent=0 // pred_check_branch
    %283 = sbr.rel (0) target = $region29
  $region28: #{_forward_impl.2} parent=0 // pred_region
    _
  $region29: #{_forward_impl.2} parent=0 // pred_fallthru
    _
  // Predicated region
  $region30: #{_forward_impl.2} parent=0 // pred_check
    _
  $region31: #{_forward_impl.2} parent=0 // pred_check_branch
    %285 = sbr.rel (0) target = $region33
  $region32: #{_forward_impl.2} parent=0 // pred_region
    _
  $region33: #{_forward_impl.2} parent=0 // pred_fallthru
    _

</llo_original>
